<compile_context>
chip_gen: v6e
topology: v6e:2x2x1
jax: 0.10.0
libtpu: 0.0.40
codegen_flags: <defaults>
</compile_context>

<pallas_src>
import functools
import math

import jax
import jax.numpy as jnp
from jax.experimental import pallas as pl
from jax.experimental.pallas import tpu as pltpu

LN_EPS = 1e-5
_LANE = 128
_SUBLANE = 8


def _round_up(x, m):
    return ((x + m - 1) // m) * m


def _pick_tm(batch, max_h_pad):
    """Batch tile: >=2 grid steps when possible (v7x megacore), 128 for wide nets."""
    cap = 128 if max_h_pad >= 2048 else 256
    if batch <= _SUBLANE:
        return _round_up(max(batch, 1), _SUBLANE)
    tm = _round_up((batch + 1) // 2, _SUBLANE)   # aim for >=2 batch-grid steps
    return min(cap, tm)


def _pick_vmem_limit(needed_bytes):
    """Per-generation VMEM budget derived from actual footprint."""
    mib = 1024 * 1024
    try:
        phys = int(pltpu.get_tpu_info().vmem_capacity_bytes)
    except Exception:
        phys = 64 * mib                      # conservative default (v7x per-TC)
    cap = max(phys - 16 * mib, 32 * mib)     # leave headroom for the compiler
    cap = min(cap, 100 * mib)                # v5e/v6e: never above ~100 MiB
    want = int(needed_bytes * 1.5) + 8 * mib
    return int(max(32 * mib, min(want, cap)))


def _make_mlp_kernel(hidden_dims, ln_eps=LN_EPS):
    """Fused kernel body for a static tuple of hidden dims."""
    inv_sqrt2 = 1.0 / math.sqrt(2.0)

    def kernel(x_ref, *args):
        o_ref = args[-1]
        p = args[:-1]            # [w, bgb] * L  +  [wc, bc]
        y = x_ref[...]           # (tm, d_pad) f32, padded lanes are exactly 0
        idx = 0
        for h in hidden_dims:    # static Python loop -> fully unrolled
            w_ref = p[idx]
            bgb_ref = p[idx + 1]
            idx += 2
            # Linear on the MXU: bf16 operands, f32 accumulation.
            y = jnp.dot(y.astype(w_ref.dtype), w_ref[...],
                        preferred_element_type=jnp.float32)
            b = bgb_ref[0:1, :]      # bias
            g = bgb_ref[1:2, :]      # LayerNorm gamma (zero-padded)
            beta = bgb_ref[2:3, :]   # LayerNorm beta  (zero-padded)
            y = y + b
            # LayerNorm over the TRUE hidden width h (biased variance, PyTorch).
            # Padded lanes of y are exactly 0 (zero-padded W columns / bias), so
            # sum(y) and sum(y*y) over the padded slab equal sums over valid
            # lanes -> no iota/mask needed.
            inv_h = 1.0 / float(h)
            mean = jnp.sum(y, axis=-1, keepdims=True) * inv_h
            var = jnp.sum(y * y, axis=-1, keepdims=True) * inv_h - mean * mean
            y = (y - mean) * jax.lax.rsqrt(var + ln_eps)
            # Affine: zero-padded gamma/beta re-zero the padded lanes.
            y = y * g + beta
            # Exact erf GELU (== torch.nn.GELU() default); GELU(0)=0 so padded
            # lanes stay 0 for the next matmul.
            y = 0.5 * y * (1.0 + jax.lax.erf(y * inv_sqrt2))
            # Dropout: inference mode -> identity.
        wc_ref = p[idx]
        bc_ref = p[idx + 1]
        y = jnp.dot(y.astype(wc_ref.dtype), wc_ref[...],
                    preferred_element_type=jnp.float32) + bc_ref[...]
        o_ref[...] = y.astype(o_ref.dtype)

    return kernel


def prepare_padded_params(layer_params, head_params, input_dim, hidden_dims,
                          num_classes, matmul_dtype=jnp.bfloat16):
    """Pad/pack/cast parameters ONCE (outside the per-call forward).

    Per hidden layer: W  -> (prev_pad, h_pad) in `matmul_dtype` (zero-padded),
                      BGB -> (8, h_pad) f32 with rows 0/1/2 = bias/gamma/beta.
    Head:             Wc -> (prev_pad, c_pad) in `matmul_dtype`,
                      bc -> (1, c_pad) f32.
    """
    flat = []
    prev_pad = _round_up(input_dim, _LANE)
    for (w, b, g, beta), h in zip(layer_params, hidden_dims):
        h_pad = _round_up(h, _LANE)
        w_p = jnp.pad(w.astype(jnp.float32),
                      ((0, prev_pad - w.shape[0]), (0, h_pad - h)))
        bgb = jnp.zeros((_SUBLANE, h_pad), jnp.float32)
        bgb = bgb.at[0, :h].set(b.astype(jnp.float32))
        bgb = bgb.at[1, :h].set(g.astype(jnp.float32))
        bgb = bgb.at[2, :h].set(beta.astype(jnp.float32))
        flat += [w_p.astype(matmul_dtype), bgb]
        prev_pad = h_pad
    wc, bc = head_params
    c_pad = _round_up(num_classes, _LANE)
    wc_p = jnp.pad(wc.astype(jnp.float32),
                   ((0, prev_pad - wc.shape[0]), (0, c_pad - num_classes)))
    bc_p = jnp.pad(bc.astype(jnp.float32).reshape(1, -1),
                   ((0, 0), (0, c_pad - num_classes)))
    flat += [wc_p.astype(matmul_dtype), bc_p]
    return tuple(flat)


@functools.partial(jax.jit, static_argnames=("hidden_dims", "num_classes"))
def category_classifier_forward(x, padded_params, *, hidden_dims, num_classes):
    B, D = x.shape
    d_pad = _round_up(D, _LANE)
    c_pad = _round_up(num_classes, _LANE)
    h_pads = tuple(_round_up(h, _LANE) for h in hidden_dims)
    max_h_pad = max(h_pads) if h_pads else c_pad
    max_feat_pad = max((d_pad, c_pad) + h_pads)

    tm = _pick_tm(B, max_h_pad)
    b_pad = _round_up(B, tm)
    grid_steps = b_pad // tm

    # Only the activation is padded per call; all weights arrive pre-padded.
    x_p = jnp.pad(x.astype(jnp.float32), ((0, b_pad - B), (0, d_pad - D)))

    # Constant-index (resident) parameter blocks: single-buffer them when the
    # grid actually pipelines (>1 step) so they are not double-buffered in VMEM.
    const_kw = {"pipeline_mode": pl.Buffered(1)} if grid_steps > 1 else {}
    const_map = lambda i: (0, 0)

    kernel_inputs = [x_p]
    in_specs = [pl.BlockSpec((tm, d_pad), lambda i: (i, 0))]

    flops = 0
    transcendentals = 0
    prev_pad = d_pad
    it = iter(padded_params)
    for h_pad in h_pads:
        w_p = next(it)
        bgb_p = next(it)
        kernel_inputs += [w_p, bgb_p]
        in_specs += [
            pl.BlockSpec((prev_pad, h_pad), const_map, **const_kw),
            pl.BlockSpec((_SUBLANE, h_pad), const_map, **const_kw),
        ]
        flops += 2 * b_pad * prev_pad * h_pad
        transcendentals += b_pad * h_pad          # one erf per hidden element
        prev_pad = h_pad
    wc_p = next(it)
    bc_p = next(it)
    kernel_inputs += [wc_p, bc_p]
    in_specs += [
        pl.BlockSpec((prev_pad, c_pad), const_map, **const_kw),
        pl.BlockSpec((1, c_pad), const_map, **const_kw),
    ]
    flops += 2 * b_pad * prev_pad * c_pad

    # VMEM budget from actual footprint: resident params (+buffering), the
    # double-buffered x/out blocks, and live-activation / spill headroom.
    param_bytes = sum(int(a.size) * a.dtype.itemsize for a in padded_params)
    param_vmem = param_bytes * (1 if const_kw else 2)
    block_vmem = 2 * tm * (d_pad + c_pad) * 4
    act_vmem = 6 * tm * max_feat_pad * 4
    vmem_limit = _pick_vmem_limit(param_vmem + block_vmem + act_vmem)
    # NOTE: if bf16 single-buffered weights still exceed the v7x per-TC budget,
    # the largest layer's W should be streamed in N-tiles (extra grid axis or
    # pltpu.emit_pipeline) instead of kept resident — not needed at these sizes.

    bytes_accessed = param_bytes + (b_pad * d_pad + b_pad * c_pad) * 4

    out_padded = pl.pallas_call(
        _make_mlp_kernel(hidden_dims),
        out_shape=jax.ShapeDtypeStruct((b_pad, c_pad), jnp.float32),
        grid=(grid_steps,),
        in_specs=in_specs,
        out_specs=pl.BlockSpec((tm, c_pad), lambda i: (i, 0)),
        compiler_params=pltpu.CompilerParams(
            dimension_semantics=("parallel",),     # shard batch tiles on v7x
            vmem_limit_bytes=vmem_limit,
        ),
        cost_estimate=pl.CostEstimate(
            flops=flops,
            transcendentals=transcendentals,
            bytes_accessed=bytes_accessed,
        ),
    )(*kernel_inputs)

    # Lane-dense (b_pad, 128k) slab computed in-kernel; slice to logical shape.
    return out_padded[:B, :num_classes]


def init_params(key, input_dim, hidden_dims, num_classes):
    """Deterministic synthetic parameters (shapes match nn.Linear / nn.LayerNorm).

    nn.Linear weight is (out, in) in PyTorch; stored transposed here as (in, out)
    so the kernel computes x @ W + b directly on the MXU.
    """
    layer_params = []
    prev = input_dim
    for h in hidden_dims:
        key, kw, kb = jax.random.split(key, 3)
        bound = 1.0 / math.sqrt(prev)
        w = jax.random.uniform(kw, (prev, h), jnp.float32, -bound, bound)
        b = jax.random.uniform(kb, (h,), jnp.float32, -bound, bound)
        gamma = jnp.ones((h,), jnp.float32)     # nn.LayerNorm default weight
        beta = jnp.zeros((h,), jnp.float32)     # nn.LayerNorm default bias
        layer_params.append((w, b, gamma, beta))
        prev = h
    key, kw, kb = jax.random.split(key, 3)
    bound = 1.0 / math.sqrt(prev)
    wc = jax.random.uniform(kw, (prev, num_classes), jnp.float32, -bound, bound)
    bc = jax.random.uniform(kb, (num_classes,), jnp.float32, -bound, bound)
    return layer_params, (wc, bc)


if __name__ == "__main__":
    # Small shapes consistent with the module's forward: x is [batch, input_dim].
    batch = 8
    input_dim = 32
    hidden_dims = (64, 32)
    num_classes = 16

    key = jax.random.PRNGKey(0)
    key, kx = jax.random.split(key)
    x = jax.random.normal(kx, (batch, input_dim), jnp.float32)

    layer_params, head_params = init_params(key, input_dim, hidden_dims, num_classes)

    # Pad / pack / cast parameters ONCE (outside the per-call forward).
    padded_params = prepare_padded_params(
        layer_params, head_params, input_dim, hidden_dims, num_classes,
        matmul_dtype=jnp.bfloat16)

    out = category_classifier_forward(
        x, padded_params, hidden_dims=hidden_dims, num_classes=num_classes)
    out = jax.block_until_ready(out)

    # Reference in plain JAX with the SAME bf16-operand / f32-accumulate matmul
    # convention (LayerNorm / GELU in f32), so the comparison is tight even
    # though the kernel uses bf16 weights (accuracy/speed trade-off from the
    # perf review).
    ref = x
    for (w, b, g, beta) in layer_params:
        y = jnp.dot(ref.astype(jnp.bfloat16), w.astype(jnp.bfloat16),
                    preferred_element_type=jnp.float32) + b
        mean = jnp.mean(y, axis=-1, keepdims=True)
        var = jnp.mean((y - mean) ** 2, axis=-1, keepdims=True)
        y = (y - mean) / jnp.sqrt(var + LN_EPS) * g + beta
        ref = jax.nn.gelu(y, approximate=False)   # exact erf GELU
    ref = jnp.dot(ref.astype(jnp.bfloat16), head_params[0].astype(jnp.bfloat16),
                  preferred_element_type=jnp.float32) + head_params[1]

    assert out.shape == (batch, num_classes)
    assert jnp.allclose(out, ref, atol=2e-3, rtol=2e-3), float(
        jnp.max(jnp.abs(out - ref)))

    print("KERNEL_OK")
</pallas_src>

<mosaic_0001>
module attributes {stable_mosaic.version = 11 : i64} {
  func.func @kernel(%arg0: i32, %arg1: memref<8x128xf32, #tpu.memory_space<vmem>>, %arg2: memref<128x128xbf16, #tpu.memory_space<vmem>>, %arg3: memref<8x128xf32, #tpu.memory_space<vmem>>, %arg4: memref<128x128xbf16, #tpu.memory_space<vmem>>, %arg5: memref<8x128xf32, #tpu.memory_space<vmem>>, %arg6: memref<128x128xbf16, #tpu.memory_space<vmem>>, %arg7: memref<1x128xf32, #tpu.memory_space<vmem>>, %arg8: memref<8x128xf32, #tpu.memory_space<vmem>>) attributes {dimension_semantics = [#tpu.dimension_semantics<parallel>], iteration_bounds = array<i64: 1>, scalar_prefetch = 0 : i64, scratch_operands = 0 : i64, tpu.core_type = #tpu.core_type<tc>, window_params = [{transform_indices = @transform_0, window_bounds = array<i64: 8, 128>}, {pipeline_mode = #tpu.pipeline_mode<synchronous>, transform_indices = @transform_1, window_bounds = array<i64: 128, 128>}, {pipeline_mode = #tpu.pipeline_mode<synchronous>, transform_indices = @transform_2, window_bounds = array<i64: 8, 128>}, {pipeline_mode = #tpu.pipeline_mode<synchronous>, transform_indices = @transform_3, window_bounds = array<i64: 128, 128>}, {pipeline_mode = #tpu.pipeline_mode<synchronous>, transform_indices = @transform_4, window_bounds = array<i64: 8, 128>}, {pipeline_mode = #tpu.pipeline_mode<synchronous>, transform_indices = @transform_5, window_bounds = array<i64: 128, 128>}, {pipeline_mode = #tpu.pipeline_mode<synchronous>, transform_indices = @transform_6, window_bounds = array<i64: 1, 128>}, {transform_indices = @transform_7, window_bounds = array<i64: 8, 128>}]} {
    %c0 = arith.constant 0 : index
    %c0_0 = arith.constant 0 : index
    %0 = vector.load %arg1[%c0, %c0_0] : memref<8x128xf32, #tpu.memory_space<vmem>>, vector<8x128xf32>
    %1 = arith.truncf %0 : vector<8x128xf32> to vector<8x128xbf16>
    %c0_1 = arith.constant 0 : index
    %c0_2 = arith.constant 0 : index
    %2 = vector.load %arg2[%c0_1, %c0_2] : memref<128x128xbf16, #tpu.memory_space<vmem>>, vector<128x128xbf16>
    %cst = arith.constant dense<0.000000e+00> : vector<8x128xf32>
    %3 = tpu.matmul %1, %2, %cst {dimension_numbers = #tpu.dot_dimension_numbers<[1], [0], [0], [1], [0, 0, 1, 1], [], []>} : vector<8x128xbf16>, vector<128x128xbf16>, vector<8x128xf32> -> vector<8x128xf32>
    %c0_3 = arith.constant 0 : index
    %c0_4 = arith.constant 0 : index
    %4 = vector.load %arg3[%c0_3, %c0_4] : memref<8x128xf32, #tpu.memory_space<vmem>>, vector<1x128xf32>
    %c1 = arith.constant 1 : index
    %c0_5 = arith.constant 0 : index
    %5 = vector.load %arg3[%c1, %c0_5] : memref<8x128xf32, #tpu.memory_space<vmem>>, vector<1x128xf32>
    %c2 = arith.constant 2 : index
    %c0_6 = arith.constant 0 : index
    %6 = vector.load %arg3[%c2, %c0_6] : memref<8x128xf32, #tpu.memory_space<vmem>>, vector<1x128xf32>
    %7 = vector.broadcast %4 : vector<1x128xf32> to vector<8x128xf32>
    %8 = arith.addf %3, %7 : vector<8x128xf32>
    %cst_7 = arith.constant dense<0.000000e+00> : vector<8xf32>
    %9 = vector.multi_reduction <add>, %8, %cst_7 [1] : vector<8x128xf32> to vector<8xf32>
    %10 = vector.shape_cast %9 : vector<8xf32> to vector<8x1xf32>
    %cst_8 = arith.constant 1.562500e-02 : f32
    %11 = vector.broadcast %cst_8 : f32 to vector<8x1xf32>
    %12 = arith.mulf %10, %11 : vector<8x1xf32>
    %13 = arith.mulf %8, %8 : vector<8x128xf32>
    %cst_9 = arith.constant dense<0.000000e+00> : vector<8xf32>
    %14 = vector.multi_reduction <add>, %13, %cst_9 [1] : vector<8x128xf32> to vector<8xf32>
    %15 = vector.shape_cast %14 : vector<8xf32> to vector<8x1xf32>
    %cst_10 = arith.constant 1.562500e-02 : f32
    %16 = vector.broadcast %cst_10 : f32 to vector<8x1xf32>
    %17 = arith.mulf %15, %16 : vector<8x1xf32>
    %18 = arith.mulf %12, %12 : vector<8x1xf32>
    %19 = arith.subf %17, %18 : vector<8x1xf32>
    %20 = vector.broadcast %12 : vector<8x1xf32> to vector<8x128xf32>
    %21 = arith.subf %8, %20 : vector<8x128xf32>
    %cst_11 = arith.constant 9.99999974E-6 : f32
    %22 = vector.broadcast %cst_11 : f32 to vector<8x1xf32>
    %23 = arith.addf %19, %22 : vector<8x1xf32>
    %24 = math.rsqrt %23 : vector<8x1xf32>
    %25 = vector.broadcast %24 : vector<8x1xf32> to vector<8x128xf32>
    %26 = arith.mulf %21, %25 : vector<8x128xf32>
    %27 = vector.broadcast %5 : vector<1x128xf32> to vector<8x128xf32>
    %28 = arith.mulf %26, %27 : vector<8x128xf32>
    %29 = vector.broadcast %6 : vector<1x128xf32> to vector<8x128xf32>
    %30 = arith.addf %28, %29 : vector<8x128xf32>
    %cst_12 = arith.constant 5.000000e-01 : f32
    %31 = vector.broadcast %cst_12 : f32 to vector<8x128xf32>
    %32 = arith.mulf %31, %30 : vector<8x128xf32>
    %cst_13 = arith.constant 0.707106769 : f32
    %33 = vector.broadcast %cst_13 : f32 to vector<8x128xf32>
    %34 = arith.mulf %30, %33 : vector<8x128xf32>
    %35 = math.erf %34 : vector<8x128xf32>
    %cst_14 = arith.constant 1.000000e+00 : f32
    %36 = vector.broadcast %cst_14 : f32 to vector<8x128xf32>
    %37 = arith.addf %36, %35 : vector<8x128xf32>
    %38 = arith.mulf %32, %37 : vector<8x128xf32>
    %39 = arith.truncf %38 : vector<8x128xf32> to vector<8x128xbf16>
    %c0_15 = arith.constant 0 : index
    %c0_16 = arith.constant 0 : index
    %40 = vector.load %arg4[%c0_15, %c0_16] : memref<128x128xbf16, #tpu.memory_space<vmem>>, vector<128x128xbf16>
    %cst_17 = arith.constant dense<0.000000e+00> : vector<8x128xf32>
    %41 = tpu.matmul %39, %40, %cst_17 {dimension_numbers = #tpu.dot_dimension_numbers<[1], [0], [0], [1], [0, 0, 1, 1], [], []>} : vector<8x128xbf16>, vector<128x128xbf16>, vector<8x128xf32> -> vector<8x128xf32>
    %c0_18 = arith.constant 0 : index
    %c0_19 = arith.constant 0 : index
    %42 = vector.load %arg5[%c0_18, %c0_19] : memref<8x128xf32, #tpu.memory_space<vmem>>, vector<1x128xf32>
    %c1_20 = arith.constant 1 : index
    %c0_21 = arith.constant 0 : index
    %43 = vector.load %arg5[%c1_20, %c0_21] : memref<8x128xf32, #tpu.memory_space<vmem>>, vector<1x128xf32>
    %c2_22 = arith.constant 2 : index
    %c0_23 = arith.constant 0 : index
    %44 = vector.load %arg5[%c2_22, %c0_23] : memref<8x128xf32, #tpu.memory_space<vmem>>, vector<1x128xf32>
    %45 = vector.broadcast %42 : vector<1x128xf32> to vector<8x128xf32>
    %46 = arith.addf %41, %45 : vector<8x128xf32>
    %cst_24 = arith.constant dense<0.000000e+00> : vector<8xf32>
    %47 = vector.multi_reduction <add>, %46, %cst_24 [1] : vector<8x128xf32> to vector<8xf32>
    %48 = vector.shape_cast %47 : vector<8xf32> to vector<8x1xf32>
    %cst_25 = arith.constant 3.125000e-02 : f32
    %49 = vector.broadcast %cst_25 : f32 to vector<8x1xf32>
    %50 = arith.mulf %48, %49 : vector<8x1xf32>
    %51 = arith.mulf %46, %46 : vector<8x128xf32>
    %cst_26 = arith.constant dense<0.000000e+00> : vector<8xf32>
    %52 = vector.multi_reduction <add>, %51, %cst_26 [1] : vector<8x128xf32> to vector<8xf32>
    %53 = vector.shape_cast %52 : vector<8xf32> to vector<8x1xf32>
    %cst_27 = arith.constant 3.125000e-02 : f32
    %54 = vector.broadcast %cst_27 : f32 to vector<8x1xf32>
    %55 = arith.mulf %53, %54 : vector<8x1xf32>
    %56 = arith.mulf %50, %50 : vector<8x1xf32>
    %57 = arith.subf %55, %56 : vector<8x1xf32>
    %58 = vector.broadcast %50 : vector<8x1xf32> to vector<8x128xf32>
    %59 = arith.subf %46, %58 : vector<8x128xf32>
    %cst_28 = arith.constant 9.99999974E-6 : f32
    %60 = vector.broadcast %cst_28 : f32 to vector<8x1xf32>
    %61 = arith.addf %57, %60 : vector<8x1xf32>
    %62 = math.rsqrt %61 : vector<8x1xf32>
    %63 = vector.broadcast %62 : vector<8x1xf32> to vector<8x128xf32>
    %64 = arith.mulf %59, %63 : vector<8x128xf32>
    %65 = vector.broadcast %43 : vector<1x128xf32> to vector<8x128xf32>
    %66 = arith.mulf %64, %65 : vector<8x128xf32>
    %67 = vector.broadcast %44 : vector<1x128xf32> to vector<8x128xf32>
    %68 = arith.addf %66, %67 : vector<8x128xf32>
    %cst_29 = arith.constant 5.000000e-01 : f32
    %69 = vector.broadcast %cst_29 : f32 to vector<8x128xf32>
    %70 = arith.mulf %69, %68 : vector<8x128xf32>
    %cst_30 = arith.constant 0.707106769 : f32
    %71 = vector.broadcast %cst_30 : f32 to vector<8x128xf32>
    %72 = arith.mulf %68, %71 : vector<8x128xf32>
    %73 = math.erf %72 : vector<8x128xf32>
    %cst_31 = arith.constant 1.000000e+00 : f32
    %74 = vector.broadcast %cst_31 : f32 to vector<8x128xf32>
    %75 = arith.addf %74, %73 : vector<8x128xf32>
    %76 = arith.mulf %70, %75 : vector<8x128xf32>
    %77 = arith.truncf %76 : vector<8x128xf32> to vector<8x128xbf16>
    %c0_32 = arith.constant 0 : index
    %c0_33 = arith.constant 0 : index
    %78 = vector.load %arg6[%c0_32, %c0_33] : memref<128x128xbf16, #tpu.memory_space<vmem>>, vector<128x128xbf16>
    %cst_34 = arith.constant dense<0.000000e+00> : vector<8x128xf32>
    %79 = tpu.matmul %77, %78, %cst_34 {dimension_numbers = #tpu.dot_dimension_numbers<[1], [0], [0], [1], [0, 0, 1, 1], [], []>} : vector<8x128xbf16>, vector<128x128xbf16>, vector<8x128xf32> -> vector<8x128xf32>
    %c0_35 = arith.constant 0 : index
    %c0_36 = arith.constant 0 : index
    %80 = vector.load %arg7[%c0_35, %c0_36] : memref<1x128xf32, #tpu.memory_space<vmem>>, vector<1x128xf32>
    %81 = vector.broadcast %80 : vector<1x128xf32> to vector<8x128xf32>
    %82 = arith.addf %79, %81 : vector<8x128xf32>
    %c0_37 = arith.constant 0 : index
    %c0_38 = arith.constant 0 : index
    %83 = vector.load %arg8[%c0_37, %c0_38] : memref<8x128xf32, #tpu.memory_space<vmem>>, vector<8x128xf32>
    tpu.vector_store %arg8[%c0_37, %c0_38], %82 {strides = array<i32>} : memref<8x128xf32, #tpu.memory_space<vmem>>, vector<8x128xf32>,
    return
  }
  func.func @transform_0(%arg0: i32) -> (i32, i32) {
    %c0_i32 = arith.constant 0 : i32
    %c0_i32_0 = arith.constant 0 : i32
    return %arg0, %c0_i32 : i32, i32
  }
  func.func @transform_1(%arg0: i32) -> (i32, i32) {
    %c0_i32 = arith.constant 0 : i32
    %c0_i32_0 = arith.constant 0 : i32
    %c0_i32_1 = arith.constant 0 : i32
    return %c0_i32, %c0_i32_0 : i32, i32
  }
  func.func @transform_2(%arg0: i32) -> (i32, i32) {
    %c0_i32 = arith.constant 0 : i32
    %c0_i32_0 = arith.constant 0 : i32
    %c0_i32_1 = arith.constant 0 : i32
    return %c0_i32, %c0_i32_0 : i32, i32
  }
  func.func @transform_3(%arg0: i32) -> (i32, i32) {
    %c0_i32 = arith.constant 0 : i32
    %c0_i32_0 = arith.constant 0 : i32
    %c0_i32_1 = arith.constant 0 : i32
    return %c0_i32, %c0_i32_0 : i32, i32
  }
  func.func @transform_4(%arg0: i32) -> (i32, i32) {
    %c0_i32 = arith.constant 0 : i32
    %c0_i32_0 = arith.constant 0 : i32
    %c0_i32_1 = arith.constant 0 : i32
    return %c0_i32, %c0_i32_0 : i32, i32
  }
  func.func @transform_5(%arg0: i32) -> (i32, i32) {
    %c0_i32 = arith.constant 0 : i32
    %c0_i32_0 = arith.constant 0 : i32
    %c0_i32_1 = arith.constant 0 : i32
    return %c0_i32, %c0_i32_0 : i32, i32
  }
  func.func @transform_6(%arg0: i32) -> (i32, i32) {
    %c0_i32 = arith.constant 0 : i32
    %c0_i32_0 = arith.constant 0 : i32
    %c0_i32_1 = arith.constant 0 : i32
    return %c0_i32, %c0_i32_0 : i32, i32
  }
  func.func @transform_7(%arg0: i32) -> (i32, i32) {
    %c0_i32 = arith.constant 0 : i32
    %c0_i32_0 = arith.constant 0 : i32
    return %arg0, %c0_i32 : i32, i32
  }
}

</mosaic_0001>

<llo_original>
// kernel: category_classifier_forward.1
$region0: #{category_classifier_forward.1}
  #allocation0 [shape = 'u32[]', space=smem, size = 0x4, offset = 0x4, fixed_abs, tag = 'smem constant byte address 0x4 - core index']
  #allocation1 [shape = 'u32[144,128]{1,0:T(1,128)}', space=vmem, size = 0x12000, scoped, tag = 'internal scratch']
  %s0 = inlined_call_operand.vmem [shape: f32[8,128], index: 0, kind: input, shape index: {}]
  %s1 = inlined_call_operand.hbm [shape: bf16[128,128], index: 1, kind: input, shape index: {}]
  %s2 = inlined_call_operand.vmem [shape: f32[8,128], index: 2, kind: input, shape index: {}]
  %s3 = inlined_call_operand.hbm [shape: bf16[128,128], index: 3, kind: input, shape index: {}]
  %s4 = inlined_call_operand.vmem [shape: f32[8,128], index: 4, kind: input, shape index: {}]
  %s5 = inlined_call_operand.hbm [shape: bf16[128,128], index: 5, kind: input, shape index: {}]
  %s6 = inlined_call_operand.vmem [shape: f32[1,128], index: 6, kind: input, shape index: {}]
  %s7 = inlined_call_operand.hbm [shape: f32[8,128], index: 7, kind: output, shape index: {}]
  %s8 = sld [smem:[#allocation0]]
  $region50: #{category_classifier_forward.1} parent=0
    _
  %s10 = ssub.s32 1, %s8
  %s11 = scalar_select 0, %s10, %s8
  $region1: #{category_classifier_forward.1} parent=0
    #allocation2 [shape = 'u8[32768]{0}', space=vmem, size = 0x8000, scoped, tag = 'input window, operand 1, single buffered']
    #allocation3 [shape = 's32[1]{0}', space=sflag, size = 0x4, scoped, tag = 'scoped memory for category_classifier_forward.1']
    #allocation4 [shape = 's32[1]{0}', space=sflag, size = 0x4, scoped, tag = 'scoped memory for category_classifier_forward.1']
    #allocation5 [shape = 'u8[32768]{0}', space=vmem, size = 0x8000, scoped, tag = 'input window, operand 3, single buffered']
    #allocation6 [shape = 's32[1]{0}', space=sflag, size = 0x4, scoped, tag = 'scoped memory for category_classifier_forward.1']
    #allocation7 [shape = 'u8[32768]{0}', space=vmem, size = 0x8000, scoped, tag = 'input window, operand 5, single buffered']
    #allocation8 [shape = 'u8[4096]{0}', space=vmem, size = 0x1000, scoped, tag = 'output window, operand 0, single buffered']
    %12 = vsyncpa [#allocation3], 0
    %13 = vsyncpa [#allocation6], 0
    %14 = vsyncpa [#allocation4], 0
    // Predicated region
    $region2: #{category_classifier_forward.1} parent=1 // pred_check
      _
    $region3: #{category_classifier_forward.1} parent=1 // pred_check_branch
      %16 = sbr.rel (0) target = $region5
    $region4: #{category_classifier_forward.1} parent=1 // pred_region
      _
    $region5: #{category_classifier_forward.1} parent=1 // pred_fallthru
      _
    // Predicated region
    $region6: #{category_classifier_forward.1} parent=1 // pred_check
      _
    $region7: #{category_classifier_forward.1} parent=1 // pred_check_branch
      %18 = sbr.rel (0) target = $region9
    $region8: #{category_classifier_forward.1} parent=1 // pred_region
      %s20 = ssub.s32 1024, 1024
      %21 = vsyncadd [#allocation3], %s20
      %s22 = sshll.u32 [#allocation2], 4
      %s23 = int_to_ptr.vmem [resolvable:$true] %s22
      %28 = dma.hbm_to_vmem [thread:$0]  %s1, 1024, %s23, [#allocation3], 64, 64, 4
    $region9: #{category_classifier_forward.1} parent=1 // pred_fallthru
      _
    // Predicated region
    $region10: #{category_classifier_forward.1} parent=1 // pred_check
      _
    $region11: #{category_classifier_forward.1} parent=1 // pred_check_branch
      %30 = sbr.rel (0) target = $region13
    $region12: #{category_classifier_forward.1} parent=1 // pred_region
      _
    $region13: #{category_classifier_forward.1} parent=1 // pred_fallthru
      _
    // Predicated region
    $region14: #{category_classifier_forward.1} parent=1 // pred_check
      _
    $region15: #{category_classifier_forward.1} parent=1 // pred_check_branch
      %32 = sbr.rel (0) target = $region17
    $region16: #{category_classifier_forward.1} parent=1 // pred_region
      %s34 = ssub.s32 1024, 1024
      %35 = vsyncadd [#allocation6], %s34
      %s36 = sshll.u32 [#allocation5], 4
      %s37 = int_to_ptr.vmem [resolvable:$true] %s36
      %42 = dma.hbm_to_vmem [thread:$0]  %s3, 1024, %s37, [#allocation6], 64, 64, 4
    $region17: #{category_classifier_forward.1} parent=1 // pred_fallthru
      _
    // Predicated region
    $region18: #{category_classifier_forward.1} parent=1 // pred_check
      _
    $region19: #{category_classifier_forward.1} parent=1 // pred_check_branch
      %44 = sbr.rel (0) target = $region21
    $region20: #{category_classifier_forward.1} parent=1 // pred_region
      _
    $region21: #{category_classifier_forward.1} parent=1 // pred_fallthru
      _
    // Predicated region
    $region22: #{category_classifier_forward.1} parent=1 // pred_check
      _
    $region23: #{category_classifier_forward.1} parent=1 // pred_check_branch
      %46 = sbr.rel (0) target = $region25
    $region24: #{category_classifier_forward.1} parent=1 // pred_region
      %s48 = ssub.s32 1024, 1024
      %49 = vsyncadd [#allocation6], %s48
      %s50 = sshll.u32 [#allocation7], 4
      %s51 = int_to_ptr.vmem [resolvable:$true] %s50
      %56 = dma.hbm_to_vmem [thread:$0]  %s5, 1024, %s51, [#allocation6], 64, 64, 4
    $region25: #{category_classifier_forward.1} parent=1 // pred_fallthru
      _
    // Predicated region
    $region26: #{category_classifier_forward.1} parent=1 // pred_check
      _
    $region27: #{category_classifier_forward.1} parent=1 // pred_check_branch
      %58 = sbr.rel (0) target = $region29
    $region28: #{category_classifier_forward.1} parent=1 // pred_region
      _
    $region29: #{category_classifier_forward.1} parent=1 // pred_fallthru
      _
    // Predicated region
    $region30: #{category_classifier_forward.1} parent=1 // pred_check
      _
    $region31: #{category_classifier_forward.1} parent=1 // pred_check_branch
      %60 = sbr.rel (0) target = $region33
    $region32: #{category_classifier_forward.1} parent=1 // pred_region
      %61 = dma.done [#allocation3], 1024
    $region33: #{category_classifier_forward.1} parent=1 // pred_fallthru
      _
    // Predicated region
    $region34: #{category_classifier_forward.1} parent=1 // pred_check
      _
    $region35: #{category_classifier_forward.1} parent=1 // pred_check_branch
      %63 = sbr.rel (0) target = $region37
    $region36: #{category_classifier_forward.1} parent=1 // pred_region
      %64 = dma.done [#allocation6], 1024
    $region37: #{category_classifier_forward.1} parent=1 // pred_fallthru
      _
    // Predicated region
    $region38: #{category_classifier_forward.1} parent=1 // pred_check
      _
    $region39: #{category_classifier_forward.1} parent=1 // pred_check_branch
      %66 = sbr.rel (0) target = $region41
    $region40: #{category_classifier_forward.1} parent=1 // pred_region
      %67 = dma.done [#allocation6], 1024
    $region41: #{category_classifier_forward.1} parent=1 // pred_fallthru
      _
    %v69 = vld [vmem:[%s0] sm:$0xff]
    %v70 = vpack.c.bf16 %v69, %v69
    %v71 = vld [vmem:[#allocation2] sm:$0xf]
    %v72 = vld [vmem:[#allocation2 + $0x4] sm:$0xf]
    %v73 = vld [vmem:[#allocation2 + $0x8] sm:$0xf]
    %v74 = vld [vmem:[#allocation2 + $0xc] sm:$0xf]
    %v75 = vld [vmem:[#allocation2 + $0x10] sm:$0xf]
    %v76 = vld [vmem:[#allocation2 + $0x14] sm:$0xf]
    %v77 = vld [vmem:[#allocation2 + $0x18] sm:$0xf]
    %v78 = vld [vmem:[#allocation2 + $0x1c] sm:$0xf]
    %v79 = vld [vmem:[#allocation2 + $0x20] sm:$0xf]
    %v80 = vld [vmem:[#allocation2 + $0x24] sm:$0xf]
    %v81 = vld [vmem:[#allocation2 + $0x28] sm:$0xf]
    %v82 = vld [vmem:[#allocation2 + $0x2c] sm:$0xf]
    %v83 = vld [vmem:[#allocation2 + $0x30] sm:$0xf]
    %v84 = vld [vmem:[#allocation2 + $0x34] sm:$0xf]
    %v85 = vld [vmem:[#allocation2 + $0x38] sm:$0xf]
    %v86 = vld [vmem:[#allocation2 + $0x3c] sm:$0xf]
    %v87 = vld [vmem:[%s2] sm:$0x1]
    %v88 = vld [vmem:[%s2 + $0x1] sm:$0x1]
    %v89 = vld [vmem:[%s2 + $0x2] sm:$0x1]
    %v90 = vlaneseq
    %v91 = vshrl.u32 %v90, 7
    %v92 = vsub.s32 0, %v91
    %v93 = vrot.slane %v87, %v92
    %v110 = vunpack.c.l.b16 %v71
    %v111 = vunpack.c.l.b16 %v72
    %v112 = vunpack.c.l.b16 %v73
    %v113 = vunpack.c.l.b16 %v74
    %v114 = vunpack.c.l.b16 %v75
    %v115 = vunpack.c.l.b16 %v76
    %v116 = vunpack.c.l.b16 %v77
    %v117 = vunpack.c.l.b16 %v78
    %v118 = vunpack.c.l.b16 %v79
    %v119 = vunpack.c.l.b16 %v80
    %v120 = vunpack.c.l.b16 %v81
    %v121 = vunpack.c.l.b16 %v82
    %v122 = vunpack.c.l.b16 %v83
    %v123 = vunpack.c.l.b16 %v84
    %v124 = vunpack.c.l.b16 %v85
    %v125 = vunpack.c.l.b16 %v86
    %v126 = vpack.c.b16 %v111, %v110
    %v127 = vpack.c.b16 %v113, %v112
    %v128 = vpack.c.b16 %v115, %v114
    %v129 = vpack.c.b16 %v117, %v116
    %v130 = vpack.c.b16 %v119, %v118
    %v131 = vpack.c.b16 %v121, %v120
    %v132 = vpack.c.b16 %v123, %v122
    %v133 = vpack.c.b16 %v125, %v124
    %142 = vmatprep.subr.bf16.mxu0 0
    %143 = vmatpush1.bf16.msra.mxu0 %v133
    %144 = vmatprep.subr.bf16.mxu0 0
    %145 = vmatpush1.bf16.msra.mxu0 %v132
    %146 = vmatprep.subr.bf16.mxu0 0
    %147 = vmatpush1.bf16.msra.mxu0 %v131
    %148 = vmatprep.subr.bf16.mxu0 0
    %149 = vmatpush1.bf16.msra.mxu0 %v130
    %150 = vmatprep.subr.bf16.mxu0 0
    %151 = vmatpush1.bf16.msra.mxu0 %v129
    %152 = vmatprep.subr.bf16.mxu0 0
    %153 = vmatpush1.bf16.msra.mxu0 %v128
    %154 = vmatprep.subr.bf16.mxu0 0
    %155 = vmatpush1.bf16.msra.mxu0 %v127
    %156 = vmatprep.subr.bf16.mxu0 0
    %157 = vmatpush1.bf16.msra.mxu0 %v126
    %158 = vmatprep.subr.bf16.mxu0 0
    %159 = vmatpush2.bf16.msra.mxu0 0
    %160 = vmatprep.subr.bf16.mxu0 0
    %161 = vmatpush2.bf16.msra.mxu0 0
    %162 = vmatprep.subr.bf16.mxu0 0
    %163 = vmatpush2.bf16.msra.mxu0 0
    %164 = vmatprep.subr.bf16.mxu0 0
    %165 = vmatpush2.bf16.msra.mxu0 0
    %166 = vmatprep.subr.bf16.mxu0 0
    %167 = vmatpush2.bf16.msra.mxu0 0
    %168 = vmatprep.subr.bf16.mxu0 0
    %169 = vmatpush2.bf16.msra.mxu0 0
    %170 = vmatprep.subr.bf16.mxu0 0
    %171 = vmatpush2.bf16.msra.mxu0 0
    %172 = vmatprep.subr.bf16.mxu0 0
    %173 = vmatpush2.bf16.msra.mxu0 0
    %174 = vmatprep.mubr.bf16.mxu0 0
    %175 = vmatmul.mubr.bf16.gmra.mxu0 %v70
    %v176 = vpop.f32.mrf.mxu0
    %v177 = vadd.f32 %v93, %v176
    %v178 = vpop.f32.mrf.mxu0
    %v179 = vpop.f32.mrf.mxu0
    %v180 = vpop.f32.mrf.mxu0
    %181 = vdwg.mxu0
    %182 = vadd.xlane.f32.xlu0 %v177
    %v183 = vpop.xlane.xlu0 %182
    %v184 = vmul.f32 %v183, 0.015625
    %v185 = vmul.f32 %v177, %v177
    %186 = vadd.xlane.f32.xlu0 %v185
    %v187 = vpop.xlane.xlu0 %186
    %v188 = vmul.f32 %v187, 0.015625
    %v189 = vmul.f32 %v184, %v184
    %v190 = vsub.f32 %v188, %v189
    %v191 = vsub.f32 %v177, %v184
    %v192 = vadd.f32 %v190, 1e-05
    %v193 = vrsqrt.pop %v192
    %v194 = vmul.f32 %v191, %v193
    %v195 = vlaneseq
    %v196 = vshrl.u32 %v195, 7
    %v197 = vsub.s32 0, %v196
    %v198 = vrot.slane %v88, %v197
    %v199 = vmul.f32 %v194, %v198
    %v200 = vlaneseq
    %v201 = vshrl.u32 %v200, 7
    %v202 = vsub.s32 0, %v201
    %v203 = vrot.slane %v89, %v202
    %v204 = vadd.f32 %v199, %v203
    %v205 = vmul.f32 %v204, 0.5
    %v206 = vmul.f32 %v204, 0.70710677
    %v207 = verf.f32.pop %v206
    %v208 = vadd.f32 %v207, 1.0
    %v209 = vmul.f32 %v205, %v208
    %v210 = vpack.c.bf16 %v209, %v209
    %v211 = vld [vmem:[#allocation5] sm:$0xf]
    %v212 = vld [vmem:[#allocation5 + $0x4] sm:$0xf]
    %v213 = vld [vmem:[#allocation5 + $0x8] sm:$0xf]
    %v214 = vld [vmem:[#allocation5 + $0xc] sm:$0xf]
    %v215 = vld [vmem:[#allocation5 + $0x10] sm:$0xf]
    %v216 = vld [vmem:[#allocation5 + $0x14] sm:$0xf]
    %v217 = vld [vmem:[#allocation5 + $0x18] sm:$0xf]
    %v218 = vld [vmem:[#allocation5 + $0x1c] sm:$0xf]
    %v219 = vld [vmem:[#allocation5 + $0x20] sm:$0xf]
    %v220 = vld [vmem:[#allocation5 + $0x24] sm:$0xf]
    %v221 = vld [vmem:[#allocation5 + $0x28] sm:$0xf]
    %v222 = vld [vmem:[#allocation5 + $0x2c] sm:$0xf]
    %v223 = vld [vmem:[#allocation5 + $0x30] sm:$0xf]
    %v224 = vld [vmem:[#allocation5 + $0x34] sm:$0xf]
    %v225 = vld [vmem:[#allocation5 + $0x38] sm:$0xf]
    %v226 = vld [vmem:[#allocation5 + $0x3c] sm:$0xf]
    %v227 = vld [vmem:[%s4] sm:$0x1]
    %v228 = vld [vmem:[%s4 + $0x1] sm:$0x1]
    %v229 = vld [vmem:[%s4 + $0x2] sm:$0x1]
    %v230 = vlaneseq
    %v231 = vshrl.u32 %v230, 7
    %v232 = vsub.s32 0, %v231
    %v233 = vrot.slane %v227, %v232
    %v250 = vunpack.c.l.b16 %v211
    %v251 = vunpack.c.l.b16 %v212
    %v252 = vunpack.c.l.b16 %v213
    %v253 = vunpack.c.l.b16 %v214
    %v254 = vunpack.c.l.b16 %v215
    %v255 = vunpack.c.l.b16 %v216
    %v256 = vunpack.c.l.b16 %v217
    %v257 = vunpack.c.l.b16 %v218
    %v258 = vunpack.c.l.b16 %v219
    %v259 = vunpack.c.l.b16 %v220
    %v260 = vunpack.c.l.b16 %v221
    %v261 = vunpack.c.l.b16 %v222
    %v262 = vunpack.c.l.b16 %v223
    %v263 = vunpack.c.l.b16 %v224
    %v264 = vunpack.c.l.b16 %v225
    %v265 = vunpack.c.l.b16 %v226
    %v266 = vpack.c.b16 %v251, %v250
    %v267 = vpack.c.b16 %v253, %v252
    %v268 = vpack.c.b16 %v255, %v254
    %v269 = vpack.c.b16 %v257, %v256
    %v270 = vpack.c.b16 %v259, %v258
    %v271 = vpack.c.b16 %v261, %v260
    %v272 = vpack.c.b16 %v263, %v262
    %v273 = vpack.c.b16 %v265, %v264
    %282 = vmatprep.subr.bf16.mxu0 0
    %283 = vmatpush1.bf16.msra.mxu0 %v273
    %284 = vmatprep.subr.bf16.mxu0 0
    %285 = vmatpush1.bf16.msra.mxu0 %v272
    %286 = vmatprep.subr.bf16.mxu0 0
    %287 = vmatpush1.bf16.msra.mxu0 %v271
    %288 = vmatprep.subr.bf16.mxu0 0
    %289 = vmatpush1.bf16.msra.mxu0 %v270
    %290 = vmatprep.subr.bf16.mxu0 0
    %291 = vmatpush1.bf16.msra.mxu0 %v269
    %292 = vmatprep.subr.bf16.mxu0 0
    %293 = vmatpush1.bf16.msra.mxu0 %v268
    %294 = vmatprep.subr.bf16.mxu0 0
    %295 = vmatpush1.bf16.msra.mxu0 %v267
    %296 = vmatprep.subr.bf16.mxu0 0
    %297 = vmatpush1.bf16.msra.mxu0 %v266
    %298 = vmatprep.subr.bf16.mxu0 0
    %299 = vmatpush2.bf16.msra.mxu0 0
    %300 = vmatprep.subr.bf16.mxu0 0
    %301 = vmatpush2.bf16.msra.mxu0 0
    %302 = vmatprep.subr.bf16.mxu0 0
    %303 = vmatpush2.bf16.msra.mxu0 0
    %304 = vmatprep.subr.bf16.mxu0 0
    %305 = vmatpush2.bf16.msra.mxu0 0
    %306 = vmatprep.subr.bf16.mxu0 0
    %307 = vmatpush2.bf16.msra.mxu0 0
    %308 = vmatprep.subr.bf16.mxu0 0
    %309 = vmatpush2.bf16.msra.mxu0 0
    %310 = vmatprep.subr.bf16.mxu0 0
    %311 = vmatpush2.bf16.msra.mxu0 0
    %312 = vmatprep.subr.bf16.mxu0 0
    %313 = vmatpush2.bf16.msra.mxu0 0
    %314 = vmatprep.mubr.bf16.mxu0 0
    %315 = vmatmul.mubr.bf16.gmra.mxu0 %v210
    %v316 = vpop.f32.mrf.mxu0
    %v317 = vadd.f32 %v233, %v316
    %v318 = vpop.f32.mrf.mxu0
    %v319 = vpop.f32.mrf.mxu0
    %v320 = vpop.f32.mrf.mxu0
    %321 = vdwg.mxu0
    %322 = vadd.xlane.f32.xlu0 %v317
    %v323 = vpop.xlane.xlu0 %322
    %v324 = vmul.f32 %v323, 0.03125
    %v325 = vmul.f32 %v317, %v317
    %326 = vadd.xlane.f32.xlu0 %v325
    %v327 = vpop.xlane.xlu0 %326
    %v328 = vmul.f32 %v327, 0.03125
    %v329 = vmul.f32 %v324, %v324
    %v330 = vsub.f32 %v328, %v329
    %v331 = vsub.f32 %v317, %v324
    %v332 = vadd.f32 %v330, 1e-05
    %v333 = vrsqrt.pop %v332
    %v334 = vmul.f32 %v331, %v333
    %v335 = vlaneseq
    %v336 = vshrl.u32 %v335, 7
    %v337 = vsub.s32 0, %v336
    %v338 = vrot.slane %v228, %v337
    %v339 = vmul.f32 %v334, %v338
    %v340 = vlaneseq
    %v341 = vshrl.u32 %v340, 7
    %v342 = vsub.s32 0, %v341
    %v343 = vrot.slane %v229, %v342
    %v344 = vadd.f32 %v339, %v343
    %v345 = vmul.f32 %v344, 0.5
    %v346 = vmul.f32 %v344, 0.70710677
    %v347 = verf.f32.pop %v346
    %v348 = vadd.f32 %v347, 1.0
    %v349 = vmul.f32 %v345, %v348
    %v350 = vpack.c.bf16 %v349, %v349
    %v351 = vld [vmem:[#allocation7] sm:$0xf]
    %v352 = vld [vmem:[#allocation7 + $0x4] sm:$0xf]
    %v353 = vld [vmem:[#allocation7 + $0x8] sm:$0xf]
    %v354 = vld [vmem:[#allocation7 + $0xc] sm:$0xf]
    %v355 = vld [vmem:[#allocation7 + $0x10] sm:$0xf]
    %v356 = vld [vmem:[#allocation7 + $0x14] sm:$0xf]
    %v357 = vld [vmem:[#allocation7 + $0x18] sm:$0xf]
    %v358 = vld [vmem:[#allocation7 + $0x1c] sm:$0xf]
    %v359 = vld [vmem:[#allocation7 + $0x20] sm:$0xf]
    %v360 = vld [vmem:[#allocation7 + $0x24] sm:$0xf]
    %v361 = vld [vmem:[#allocation7 + $0x28] sm:$0xf]
    %v362 = vld [vmem:[#allocation7 + $0x2c] sm:$0xf]
    %v363 = vld [vmem:[#allocation7 + $0x30] sm:$0xf]
    %v364 = vld [vmem:[#allocation7 + $0x34] sm:$0xf]
    %v365 = vld [vmem:[#allocation7 + $0x38] sm:$0xf]
    %v366 = vld [vmem:[#allocation7 + $0x3c] sm:$0xf]
    %v367 = vld [vmem:[%s6] sm:$0x1]
    %v369 = vlaneseq
    %v370 = vshrl.u32 %v369, 7
    %v371 = vsub.s32 0, %v370
    %v372 = vrot.slane %v367, %v371
    %v390 = vunpack.c.l.b16 %v351
    %v391 = vunpack.c.l.b16 %v352
    %v392 = vunpack.c.l.b16 %v353
    %v393 = vunpack.c.l.b16 %v354
    %v394 = vunpack.c.l.b16 %v355
    %v395 = vunpack.c.l.b16 %v356
    %v396 = vunpack.c.l.b16 %v357
    %v397 = vunpack.c.l.b16 %v358
    %v398 = vunpack.c.l.b16 %v359
    %v399 = vunpack.c.l.b16 %v360
    %v400 = vunpack.c.l.b16 %v361
    %v401 = vunpack.c.l.b16 %v362
    %v402 = vunpack.c.l.b16 %v363
    %v403 = vunpack.c.l.b16 %v364
    %v404 = vunpack.c.l.b16 %v365
    %v405 = vunpack.c.l.b16 %v366
    %v406 = vpack.c.b16 %v391, %v390
    %v407 = vpack.c.b16 %v393, %v392
    %v408 = vpack.c.b16 %v395, %v394
    %v409 = vpack.c.b16 %v397, %v396
    %v410 = vpack.c.b16 %v399, %v398
    %v411 = vpack.c.b16 %v401, %v400
    %v412 = vpack.c.b16 %v403, %v402
    %v413 = vpack.c.b16 %v405, %v404
    %422 = vmatprep.subr.bf16.mxu0 0
    %423 = vmatpush1.bf16.msra.mxu0 %v413
    %424 = vmatprep.subr.bf16.mxu0 0
    %425 = vmatpush1.bf16.msra.mxu0 %v412
    %426 = vmatprep.subr.bf16.mxu0 0
    %427 = vmatpush1.bf16.msra.mxu0 %v411
    %428 = vmatprep.subr.bf16.mxu0 0
    %429 = vmatpush1.bf16.msra.mxu0 %v410
    %430 = vmatprep.subr.bf16.mxu0 0
    %431 = vmatpush1.bf16.msra.mxu0 %v409
    %432 = vmatprep.subr.bf16.mxu0 0
    %433 = vmatpush1.bf16.msra.mxu0 %v408
    %434 = vmatprep.subr.bf16.mxu0 0
    %435 = vmatpush1.bf16.msra.mxu0 %v407
    %436 = vmatprep.subr.bf16.mxu0 0
    %437 = vmatpush1.bf16.msra.mxu0 %v406
    %438 = vmatprep.subr.bf16.mxu0 0
    %439 = vmatpush2.bf16.msra.mxu0 0
    %440 = vmatprep.subr.bf16.mxu0 0
    %441 = vmatpush2.bf16.msra.mxu0 0
    %442 = vmatprep.subr.bf16.mxu0 0
    %443 = vmatpush2.bf16.msra.mxu0 0
    %444 = vmatprep.subr.bf16.mxu0 0
    %445 = vmatpush2.bf16.msra.mxu0 0
    %446 = vmatprep.subr.bf16.mxu0 0
    %447 = vmatpush2.bf16.msra.mxu0 0
    %448 = vmatprep.subr.bf16.mxu0 0
    %449 = vmatpush2.bf16.msra.mxu0 0
    %450 = vmatprep.subr.bf16.mxu0 0
    %451 = vmatpush2.bf16.msra.mxu0 0
    %452 = vmatprep.subr.bf16.mxu0 0
    %453 = vmatpush2.bf16.msra.mxu0 0
    %454 = vmatprep.mubr.bf16.mxu0 0
    %455 = vmatmul.mubr.bf16.gmra.mxu0 %v350
    %v456 = vpop.f32.mrf.mxu0
    %v457 = vadd.f32 %v372, %v456
    %v458 = vpop.f32.mrf.mxu0
    %v459 = vpop.f32.mrf.mxu0
    %v460 = vpop.f32.mrf.mxu0
    %461 = vdwg.mxu0
    %462 = vst [vmem:[#allocation8] sm:$0xff] %v457
    // Predicated region
    $region42: #{category_classifier_forward.1} parent=1 // pred_check
      _
    $region43: #{category_classifier_forward.1} parent=1 // pred_check_branch
      %464 = sbr.rel (0) target = $region45
    $region44: #{category_classifier_forward.1} parent=1 // pred_region
      %s466 = ssub.s32 128, 128
      %467 = vsyncadd [#allocation4], %s466
      %s469 = sshll.u32 [#allocation8], 4
      %s470 = int_to_ptr.vmem [resolvable:$true] %s469
      %472 = dma.vmem_to_hbm [thread:$0]  %s470, 128, %s7, [#allocation4]
    $region45: #{category_classifier_forward.1} parent=1 // pred_fallthru
      _
    // Predicated region
    $region46: #{category_classifier_forward.1} parent=1 // pred_check
      _
    $region47: #{category_classifier_forward.1} parent=1 // pred_check_branch
      %474 = sbr.rel (0) target = $region49
    $region48: #{category_classifier_forward.1} parent=1 // pred_region
      %475 = dma.done [#allocation4], 128
    $region49: #{category_classifier_forward.1} parent=1 // pred_fallthru
      _
    %476 = vsyncpa [#allocation3], 1
    %477 = vsyncpa [#allocation6], 1
    %478 = vsyncpa [#allocation4], 1

</llo_original>
